<compile_context>
chip_gen: v5e
topology: v5e:2x2
jax: 0.10.0
libtpu: 0.0.40
codegen_flags: <defaults>
</compile_context>

<pallas_src>
import functools

import jax
import jax.numpy as jnp
from jax.experimental import pallas as pl
from jax.experimental.pallas import tpu as pltpu

_LANE = 128
_DEFAULT_BLOCK_B = 512
_SPLIT_FLOOR = 256          # minimum half-tile when splitting the batch for 2-TC sharding


def _round_up(x: int, m: int) -> int:
    return (x + m - 1) // m * m


def _sublane_granularity(*dtypes) -> int:
    # Minimum second-to-last tile dim: f32 -> 8, bf16 -> 16, 8-bit -> 32.
    g = 8
    for dt in dtypes:
        g = max(g, 32 // max(jnp.dtype(dt).itemsize, 1))
    return g


@functools.lru_cache(maxsize=None)
def _vmem_config():
    """(soft_budget_bytes, hard_vmem_limit_bytes) for the current chip generation."""
    phys = 64 << 20  # conservative fallback (v7x per-TC VMEM)
    try:
        phys = int(pltpu.get_tpu_info().vmem_capacity_bytes)
    except Exception:
        try:
            kind = jax.devices()[0].device_kind.lower()
            if "v7" not in kind:
                phys = 128 << 20  # v5e / v6e
        except Exception:
            pass
    soft = (phys * 4) // 5            # leave headroom for Mosaic internal scratch
    hard = phys - (8 << 20)           # never ask the compiler for more than this
    return soft, hard


@functools.lru_cache(maxsize=None)
def _mxu_m_floor() -> int:
    # Don't shrink the batch tile below the MXU M dimension (128 on v5e, 256 otherwise).
    try:
        kind = jax.devices()[0].device_kind.lower()
        if "v5e" in kind or "v5 lite" in kind or "v5lite" in kind:
            return 128
    except Exception:
        pass
    return 256


# --------------------------------------------------------------------------- kernels

def _resident_kernel(x_ref, w1_ref, b1_ref, w2_ref, b2_ref, o_ref):
    # x_ref: (bb, in_p); w1_ref: (in_p, nf_p); w2_ref: (nf_p, nf_p); biases (1, nf_p).
    h = jnp.dot(x_ref[...], w1_ref[...], preferred_element_type=jnp.float32)
    h = h + b1_ref[...].astype(jnp.float32)
    h = h * jax.nn.sigmoid(h)                     # SiLU: EUP sigmoid + VPU multiply
    y = jnp.dot(h.astype(w2_ref.dtype), w2_ref[...],
                preferred_element_type=jnp.float32)
    o_ref[...] = (y + b2_ref[...].astype(jnp.float32)).astype(o_ref.dtype)


def _hidden_tiled_kernel(x_ref, w1_ref, b1_ref, w2_ref, b2_ref, o_ref, acc_ref):
    # Grid = (batch tiles, hidden tiles).  Hidden (nf) axis is a reduction for the
    # second matmul; each hidden chunk's SiLU is independent, so tiling is exact.
    k = pl.program_id(1)

    @pl.when(k == 0)
    def _():
        acc_ref[...] = jnp.zeros_like(acc_ref)

    h = jnp.dot(x_ref[...], w1_ref[...], preferred_element_type=jnp.float32)
    h = h + b1_ref[...].astype(jnp.float32)
    h = h * jax.nn.sigmoid(h)
    acc_ref[...] += jnp.dot(h.astype(w2_ref.dtype), w2_ref[...],
                            preferred_element_type=jnp.float32)

    @pl.when(k == pl.num_programs(1) - 1)
    def _():
        o_ref[...] = (acc_ref[...] + b2_ref[...].astype(jnp.float32)).astype(o_ref.dtype)


# --------------------------------------------------------------------------- wrappers

def prepare_vector_embedding_params(w1, b1, w2, b2, *, weight_dtype=None):
    """One-time transpose + zero-pad (+ optional cast) of torch-layout params.

    Hoisted out of the per-call path so each forward pass pays no HBM read/write
    of W1/W2 for layout plumbing.
    """
    num_f, in_f = w1.shape
    assert w2.shape == (num_f, num_f), "w2 must be [num_features, num_features]"
    assert b1.shape == (num_f,) and b2.shape == (num_f,)
    if weight_dtype is not None:
        w1, b1, w2, b2 = (a.astype(weight_dtype) for a in (w1, b1, w2, b2))
    in_p = _round_up(in_f, _LANE)
    nf_p = _round_up(num_f, _LANE)
    # Zero-padding is exact: padded K columns contribute 0 to the first dot, padded
    # hidden units are silu(0) = 0 and multiply zero rows of W2, padded outputs are
    # sliced off after the kernel.
    w1_t = jnp.pad(w1.T, ((0, in_p - in_f), (0, nf_p - num_f)))
    w2_t = jnp.pad(w2.T, ((0, nf_p - num_f), (0, nf_p - num_f)))
    b1_p = jnp.pad(b1, (0, nf_p - num_f)).reshape(1, nf_p)
    b2_p = jnp.pad(b2, (0, nf_p - num_f)).reshape(1, nf_p)
    return {"w1_t": w1_t, "b1": b1_p, "w2_t": w2_t, "b2": b2_p,
            "input_features": int(in_f), "num_features": int(num_f)}


def vector_embedding_prepared(x, params, *, block_b=_DEFAULT_BLOCK_B,
                              force_hidden_tiling=False, hidden_block=None):
    """Fused MLP embedding: silu(x @ W1^T + b1) @ W2^T + b2 with prepared params."""
    in_f = params["input_features"]
    num_f = params["num_features"]
    w1_t, b1_p, w2_t, b2_p = params["w1_t"], params["b1"], params["w2_t"], params["b2"]
    in_p, nf_p = w1_t.shape
    assert w2_t.shape == (nf_p, nf_p)
    assert x.shape[-1] == in_f

    lead_shape = x.shape[:-1]
    x2 = x.reshape(-1, in_f)
    B = x2.shape[0]
    out_dtype = x.dtype
    w_dtype = w1_t.dtype

    # Stream x in the narrower of (x dtype, weight dtype): halves x DMA bytes for
    # bf16 weights and removes the per-element cast from the kernel hot loop.
    x_stream_dtype = w_dtype if jnp.dtype(w_dtype).itemsize < jnp.dtype(x.dtype).itemsize \
        else x.dtype

    x_bytes = jnp.dtype(x_stream_dtype).itemsize
    w_bytes = jnp.dtype(w_dtype).itemsize
    o_bytes = jnp.dtype(out_dtype).itemsize
    g = _sublane_granularity(x_stream_dtype, out_dtype)
    soft_budget, hard_limit = _vmem_config()

    def resident_vmem(bb_, weight_bufs):
        io = 2 * bb_ * in_p * x_bytes + 2 * bb_ * nf_p * o_bytes          # streamed x / out
        wts = weight_bufs * (in_p * nf_p + nf_p * nf_p + 2 * nf_p) * w_bytes
        inter = bb_ * nf_p * (4 + 4 + w_bytes)                            # h f32, y f32, h cast
        return io + wts + inter

    # Batch tile: as big as possible, never below the MXU M dim / sublane minimum.
    bb = max(g, _round_up(min(block_b, _round_up(B, g)), g))
    bb_floor = max(g, min(bb, _mxu_m_floor()))
    while bb > bb_floor and resident_vmem(bb, 1) > soft_budget:
        bb = max(bb_floor, _round_up(bb // 2, g))

    use_hidden = force_hidden_tiling or (resident_vmem(bb, 1) > soft_budget)

    # ------------------------------------------------------------------ resident path
    def run_resident(single_buffer_weights):
        bb_r = bb
        B_p = _round_up(B, bb_r)
        # Give the parallel batch axis >= 2 steps when a single tile would cover a
        # large batch, so v7x's 2 TensorCores both get work.
        if B_p // bb_r == 1:
            half = _round_up((bb_r + 1) // 2, g)
            if half >= _SPLIT_FLOOR:
                bb_r = half
                B_p = _round_up(B, bb_r)
        grid = (B_p // bb_r,)

        x_p = jnp.pad(x2.astype(x_stream_dtype), ((0, B_p - B), (0, in_p - in_f)))

        weight_mode = dict(pipeline_mode=pl.Buffered(1)) if single_buffer_weights else {}
        weight_bufs = 1 if single_buffer_weights else 2
        vmem_limit = int(min(max(resident_vmem(bb_r, weight_bufs) + (4 << 20), 16 << 20),
                             hard_limit))

        flops = 2 * B_p * in_p * nf_p + 2 * B_p * nf_p * nf_p
        bytes_accessed = (B_p * in_p * x_bytes + B_p * nf_p * o_bytes
                          + (in_p * nf_p + nf_p * nf_p + 2 * nf_p) * w_bytes)
        cost = pl.CostEstimate(flops=flops, transcendentals=B_p * nf_p,
                               bytes_accessed=bytes_accessed)

        return pl.pallas_call(
            _resident_kernel,
            out_shape=jax.ShapeDtypeStruct((B_p, nf_p), out_dtype),
            grid_spec=pltpu.PrefetchScalarGridSpec(
                num_scalar_prefetch=0,
                grid=grid,
                in_specs=[
                    pl.BlockSpec((bb_r, in_p), lambda i: (i, 0)),                 # x streams
                    pl.BlockSpec((in_p, nf_p), lambda i: (0, 0), **weight_mode),  # W1 resident
                    pl.BlockSpec((1, nf_p), lambda i: (0, 0), **weight_mode),     # b1 resident
                    pl.BlockSpec((nf_p, nf_p), lambda i: (0, 0), **weight_mode),  # W2 resident
                    pl.BlockSpec((1, nf_p), lambda i: (0, 0), **weight_mode),     # b2 resident
                ],
                out_specs=pl.BlockSpec((bb_r, nf_p), lambda i: (i, 0)),
            ),
            compiler_params=pltpu.CompilerParams(
                dimension_semantics=("parallel",),
                vmem_limit_bytes=vmem_limit,
            ),
            cost_estimate=cost,
        )(x_p, w1_t, b1_p, w2_t, b2_p)

    # --------------------------------------------------------------- hidden-tiled path
    def run_hidden():
        bb_h = bb

        def hidden_vmem(bb_, tk_):
            io = 2 * bb_ * in_p * x_bytes + 2 * bb_ * nf_p * o_bytes
            wts = 2 * (in_p * tk_ + tk_ * nf_p + tk_ + nf_p) * w_bytes
            acc = bb_ * nf_p * 4
            inter = bb_ * tk_ * (4 + w_bytes)
            return io + wts + acc + inter

        tk = nf_p if hidden_block is None else hidden_block
        tk = max(_LANE, _round_up(min(tk, nf_p), _LANE))
        while tk > _LANE and hidden_vmem(bb_h, tk) > soft_budget:
            tk = max(_LANE, _round_up(tk // 2, _LANE))
        while bb_h > max(g, 128) and hidden_vmem(bb_h, tk) > soft_budget:
            bb_h = max(max(g, 128), _round_up(bb_h // 2, g))
        while nf_p % tk:          # keep hidden tiles exact (no partial blocks)
            tk -= _LANE

        B_p = _round_up(B, bb_h)
        grid = (B_p // bb_h, nf_p // tk)
        x_p = jnp.pad(x2.astype(x_stream_dtype), ((0, B_p - B), (0, in_p - in_f)))

        vmem_limit = int(min(max(hidden_vmem(bb_h, tk) + (4 << 20), 16 << 20), hard_limit))
        flops = 2 * B_p * in_p * nf_p + 2 * B_p * nf_p * nf_p
        bytes_accessed = (B_p * in_p * x_bytes + B_p * nf_p * o_bytes
                          + grid[0] * (in_p * nf_p + nf_p * nf_p + nf_p) * w_bytes
                          + nf_p * w_bytes)
        cost = pl.CostEstimate(flops=flops, transcendentals=B_p * nf_p,
                               bytes_accessed=bytes_accessed)

        return pl.pallas_call(
            _hidden_tiled_kernel,
            out_shape=jax.ShapeDtypeStruct((B_p, nf_p), out_dtype),
            grid_spec=pltpu.PrefetchScalarGridSpec(
                num_scalar_prefetch=0,
                grid=grid,
                in_specs=[
                    pl.BlockSpec((bb_h, in_p), lambda i, k: (i, 0)),   # x resident per i
                    pl.BlockSpec((in_p, tk), lambda i, k: (0, k)),     # W1 chunk streams
                    pl.BlockSpec((1, tk), lambda i, k: (0, k)),        # b1 chunk streams
                    pl.BlockSpec((tk, nf_p), lambda i, k: (k, 0)),     # W2 chunk streams
                    pl.BlockSpec((1, nf_p), lambda i, k: (0, 0)),      # b2 resident
                ],
                out_specs=pl.BlockSpec((bb_h, nf_p), lambda i, k: (i, 0)),
                scratch_shapes=[pltpu.VMEM((bb_h, nf_p), jnp.float32)],
            ),
            compiler_params=pltpu.CompilerParams(
                dimension_semantics=("parallel", "arbitrary"),
                vmem_limit_bytes=vmem_limit,
            ),
            cost_estimate=cost,
        )(x_p, w1_t, b1_p, w2_t, b2_p)

    if use_hidden:
        out = run_hidden()
    else:
        try:
            out = run_resident(True)
        except Exception:
            # Fallback if this jax version does not honor pipeline_mode=pl.Buffered(1).
            out = run_resident(False)

    out = out[:B, :num_f]
    return out.reshape(*lead_shape, num_f)


def vector_embedding(x, w1, b1, w2, b2, *, block_b=_DEFAULT_BLOCK_B):
    """Convenience one-shot wrapper (prepares torch-layout params internally)."""
    params = prepare_vector_embedding_params(w1, b1, w2, b2)
    return vector_embedding_prepared(x, params, block_b=block_b)


def _reference(x, w1, b1, w2, b2):
    xf = x.astype(jnp.float32)
    h = xf @ w1.T.astype(jnp.float32) + b1.astype(jnp.float32)
    h = h * jax.nn.sigmoid(h)
    return h @ w2.T.astype(jnp.float32) + b2.astype(jnp.float32)


if __name__ == "__main__":
    key = jax.random.PRNGKey(0)
    (k_x, k_w1, k_b1, k_w2, k_b2,
     k_x2, k_w1b, k_b1b, k_w2b, k_b2b) = jax.random.split(key, 10)

    # --- Case 1: small module (input_features=32, num_features=64), resident path ---
    batch, input_features, num_features = 4, 32, 64
    x = jax.random.normal(k_x, (batch, input_features), jnp.float32)
    # torch.nn.Linear-shaped params: weight (out, in), bias (out,)
    w1 = jax.random.normal(k_w1, (num_features, input_features), jnp.float32) * 0.05
    b1 = jax.random.normal(k_b1, (num_features,), jnp.float32) * 0.05
    w2 = jax.random.normal(k_w2, (num_features, num_features), jnp.float32) * 0.05
    b2 = jax.random.normal(k_b2, (num_features,), jnp.float32) * 0.05
    ref = _reference(x, w1, b1, w2, b2)

    params_f32 = prepare_vector_embedding_params(w1, b1, w2, b2)
    out_f32 = jax.block_until_ready(vector_embedding_prepared(x, params_f32))
    assert out_f32.shape == (batch, num_features)
    assert jnp.allclose(out_f32, ref, atol=1e-5, rtol=1e-5), "f32 mismatch vs reference"

    # bf16-weight fast path (cast once at prepare time, f32 MXU accumulation).
    params_bf16 = prepare_vector_embedding_params(w1, b1, w2, b2, weight_dtype=jnp.bfloat16)
    out_bf16 = jax.block_until_ready(vector_embedding_prepared(x, params_bf16))
    assert out_bf16.shape == (batch, num_features)
    assert jnp.allclose(out_bf16.astype(jnp.float32), ref, atol=3e-2, rtol=3e-2), \
        "bf16 mismatch vs reference"

    # Convenience wrapper (prepares params per call).
    out_conv = jax.block_until_ready(vector_embedding(x, w1, b1, w2, b2))
    assert jnp.allclose(out_conv, ref, atol=1e-5, rtol=1e-5), "wrapper mismatch vs reference"

    # --- Case 2: exercise the hidden-dim-tiled fallback (multi-step accumulation) ---
    batch2, in_f2, num_f2 = 12, 192, 320
    x2 = jax.random.normal(k_x2, (batch2, in_f2), jnp.float32)
    w1b = jax.random.normal(k_w1b, (num_f2, in_f2), jnp.float32) * 0.03
    b1b = jax.random.normal(k_b1b, (num_f2,), jnp.float32) * 0.03
    w2b = jax.random.normal(k_w2b, (num_f2, num_f2), jnp.float32) * 0.03
    b2b = jax.random.normal(k_b2b, (num_f2,), jnp.float32) * 0.03
    ref2 = _reference(x2, w1b, b1b, w2b, b2b)

    params2 = prepare_vector_embedding_params(w1b, b1b, w2b, b2b)
    out2 = jax.block_until_ready(
        vector_embedding_prepared(x2, params2, force_hidden_tiling=True, hidden_block=128))
    assert out2.shape == (batch2, num_f2)
    assert jnp.allclose(out2, ref2, atol=1e-3, rtol=1e-3), "hidden-tiled mismatch vs reference"

    print("KERNEL_OK")
</pallas_src>

<mosaic_0001>
module attributes {stable_mosaic.version = 11 : i64} {
  func.func @_resident_kernel(%arg0: i32, %arg1: memref<8x128xf32, #tpu.memory_space<vmem>>, %arg2: memref<128x128xf32, #tpu.memory_space<vmem>>, %arg3: memref<1x128xf32, #tpu.memory_space<vmem>>, %arg4: memref<128x128xf32, #tpu.memory_space<vmem>>, %arg5: memref<1x128xf32, #tpu.memory_space<vmem>>, %arg6: memref<8x128xf32, #tpu.memory_space<vmem>>) attributes {dimension_semantics = [#tpu.dimension_semantics<parallel>], iteration_bounds = array<i64: 1>, scalar_prefetch = 0 : i64, scratch_operands = 0 : i64, tpu.core_type = #tpu.core_type<tc>, window_params = [{transform_indices = @transform_0, window_bounds = array<i64: 8, 128>}, {pipeline_mode = #tpu.pipeline_mode<synchronous>, transform_indices = @transform_1, window_bounds = array<i64: 128, 128>}, {pipeline_mode = #tpu.pipeline_mode<synchronous>, transform_indices = @transform_2, window_bounds = array<i64: 1, 128>}, {pipeline_mode = #tpu.pipeline_mode<synchronous>, transform_indices = @transform_3, window_bounds = array<i64: 128, 128>}, {pipeline_mode = #tpu.pipeline_mode<synchronous>, transform_indices = @transform_4, window_bounds = array<i64: 1, 128>}, {transform_indices = @transform_5, window_bounds = array<i64: 8, 128>}]} {
    %c0 = arith.constant 0 : index
    %c0_0 = arith.constant 0 : index
    %0 = vector.load %arg1[%c0, %c0_0] : memref<8x128xf32, #tpu.memory_space<vmem>>, vector<8x128xf32>
    %c0_1 = arith.constant 0 : index
    %c0_2 = arith.constant 0 : index
    %1 = vector.load %arg2[%c0_1, %c0_2] : memref<128x128xf32, #tpu.memory_space<vmem>>, vector<128x128xf32>
    %cst = arith.constant dense<0.000000e+00> : vector<8x128xf32>
    %2 = tpu.matmul %0, %1, %cst {dimension_numbers = #tpu.dot_dimension_numbers<[1], [0], [0], [1], [0, 0, 1, 1], [], []>} : vector<8x128xf32>, vector<128x128xf32>, vector<8x128xf32> -> vector<8x128xf32>
    %c0_3 = arith.constant 0 : index
    %c0_4 = arith.constant 0 : index
    %3 = vector.load %arg3[%c0_3, %c0_4] : memref<1x128xf32, #tpu.memory_space<vmem>>, vector<1x128xf32>
    %4 = vector.broadcast %3 : vector<1x128xf32> to vector<8x128xf32>
    %5 = arith.addf %2, %4 : vector<8x128xf32>
    %6 = arith.negf %5 : vector<8x128xf32>
    %7 = math.exp %6 : vector<8x128xf32>
    %cst_5 = arith.constant 1.000000e+00 : f32
    %8 = vector.broadcast %cst_5 : f32 to vector<8x128xf32>
    %9 = arith.addf %8, %7 : vector<8x128xf32>
    %10 = arith.divf %8, %9 : vector<8x128xf32>
    %11 = arith.mulf %5, %10 : vector<8x128xf32>
    %c0_6 = arith.constant 0 : index
    %c0_7 = arith.constant 0 : index
    %12 = vector.load %arg4[%c0_6, %c0_7] : memref<128x128xf32, #tpu.memory_space<vmem>>, vector<128x128xf32>
    %cst_8 = arith.constant dense<0.000000e+00> : vector<8x128xf32>
    %13 = tpu.matmul %11, %12, %cst_8 {dimension_numbers = #tpu.dot_dimension_numbers<[1], [0], [0], [1], [0, 0, 1, 1], [], []>} : vector<8x128xf32>, vector<128x128xf32>, vector<8x128xf32> -> vector<8x128xf32>
    %c0_9 = arith.constant 0 : index
    %c0_10 = arith.constant 0 : index
    %14 = vector.load %arg5[%c0_9, %c0_10] : memref<1x128xf32, #tpu.memory_space<vmem>>, vector<1x128xf32>
    %15 = vector.broadcast %14 : vector<1x128xf32> to vector<8x128xf32>
    %16 = arith.addf %13, %15 : vector<8x128xf32>
    %c0_11 = arith.constant 0 : index
    %c0_12 = arith.constant 0 : index
    %17 = vector.load %arg6[%c0_11, %c0_12] : memref<8x128xf32, #tpu.memory_space<vmem>>, vector<8x128xf32>
    tpu.vector_store %arg6[%c0_11, %c0_12], %16 {strides = array<i32>} : memref<8x128xf32, #tpu.memory_space<vmem>>, vector<8x128xf32>,
    return
  }
  func.func @transform_0(%arg0: i32) -> (i32, i32) {
    %c0_i32 = arith.constant 0 : i32
    %c0_i32_0 = arith.constant 0 : i32
    return %arg0, %c0_i32 : i32, i32
  }
  func.func @transform_1(%arg0: i32) -> (i32, i32) {
    %c0_i32 = arith.constant 0 : i32
    %c0_i32_0 = arith.constant 0 : i32
    %c0_i32_1 = arith.constant 0 : i32
    return %c0_i32, %c0_i32_0 : i32, i32
  }
  func.func @transform_2(%arg0: i32) -> (i32, i32) {
    %c0_i32 = arith.constant 0 : i32
    %c0_i32_0 = arith.constant 0 : i32
    %c0_i32_1 = arith.constant 0 : i32
    return %c0_i32, %c0_i32_0 : i32, i32
  }
  func.func @transform_3(%arg0: i32) -> (i32, i32) {
    %c0_i32 = arith.constant 0 : i32
    %c0_i32_0 = arith.constant 0 : i32
    %c0_i32_1 = arith.constant 0 : i32
    return %c0_i32, %c0_i32_0 : i32, i32
  }
  func.func @transform_4(%arg0: i32) -> (i32, i32) {
    %c0_i32 = arith.constant 0 : i32
    %c0_i32_0 = arith.constant 0 : i32
    %c0_i32_1 = arith.constant 0 : i32
    return %c0_i32, %c0_i32_0 : i32, i32
  }
  func.func @transform_5(%arg0: i32) -> (i32, i32) {
    %c0_i32 = arith.constant 0 : i32
    %c0_i32_0 = arith.constant 0 : i32
    return %arg0, %c0_i32 : i32, i32
  }
}

module attributes {stable_mosaic.version = 11 : i64} {
  func.func @_resident_kernel(%arg0: i32, %arg1: memref<8x128xf32, #tpu.memory_space<vmem>>, %arg2: memref<128x128xf32, #tpu.memory_space<vmem>>, %arg3: memref<1x128xf32, #tpu.memory_space<vmem>>, %arg4: memref<128x128xf32, #tpu.memory_space<vmem>>, %arg5: memref<1x128xf32, #tpu.memory_space<vmem>>, %arg6: memref<8x128xf32, #tpu.memory_space<vmem>>) attributes {dimension_semantics = [#tpu.dimension_semantics<parallel>], iteration_bounds = array<i64: 1>, scalar_prefetch = 0 : i64, scratch_operands = 0 : i64, tpu.core_type = #tpu.core_type<tc>, window_params = [{transform_indices = @transform_0, window_bounds = array<i64: 8, 128>}, {pipeline_mode = #tpu.pipeline_mode<synchronous>, transform_indices = @transform_1, window_bounds = array<i64: 128, 128>}, {pipeline_mode = #tpu.pipeline_mode<synchronous>, transform_indices = @transform_2, window_bounds = array<i64: 1, 128>}, {pipeline_mode = #tpu.pipeline_mode<synchronous>, transform_indices = @transform_3, window_bounds = array<i64: 128, 128>}, {pipeline_mode = #tpu.pipeline_mode<synchronous>, transform_indices = @transform_4, window_bounds = array<i64: 1, 128>}, {transform_indices = @transform_5, window_bounds = array<i64: 8, 128>}]} {
    %c0 = arith.constant 0 : index
    %c0_0 = arith.constant 0 : index
    %0 = vector.load %arg1[%c0, %c0_0] : memref<8x128xf32, #tpu.memory_space<vmem>>, vector<8x128xf32>
    %c0_1 = arith.constant 0 : index
    %c0_2 = arith.constant 0 : index
    %1 = vector.load %arg2[%c0_1, %c0_2] : memref<128x128xf32, #tpu.memory_space<vmem>>, vector<128x128xf32>
    %cst = arith.constant dense<0.000000e+00> : vector<8x128xf32>
    %2 = tpu.matmul %0, %1, %cst {dimension_numbers = #tpu.dot_dimension_numbers<[1], [0], [0], [1], [0, 0, 1, 1], [], []>} : vector<8x128xf32>, vector<128x128xf32>, vector<8x128xf32> -> vector<8x128xf32>
    %c0_3 = arith.constant 0 : index
    %c0_4 = arith.constant 0 : index
    %3 = vector.load %arg3[%c0_3, %c0_4] : memref<1x128xf32, #tpu.memory_space<vmem>>, vector<1x128xf32>
    %4 = vector.broadcast %3 : vector<1x128xf32> to vector<8x128xf32>
    %5 = arith.addf %2, %4 : vector<8x128xf32>
    %6 = arith.negf %5 : vector<8x128xf32>
    %7 = math.exp %6 : vector<8x128xf32>
    %cst_5 = arith.constant 1.000000e+00 : f32
    %8 = vector.broadcast %cst_5 : f32 to vector<8x128xf32>
    %9 = arith.addf %8, %7 : vector<8x128xf32>
    %10 = arith.divf %8, %9 : vector<8x128xf32>
    %11 = arith.mulf %5, %10 : vector<8x128xf32>
    %c0_6 = arith.constant 0 : index
    %c0_7 = arith.constant 0 : index
    %12 = vector.load %arg4[%c0_6, %c0_7] : memref<128x128xf32, #tpu.memory_space<vmem>>, vector<128x128xf32>
    %cst_8 = arith.constant dense<0.000000e+00> : vector<8x128xf32>
    %13 = tpu.matmul %11, %12, %cst_8 {dimension_numbers = #tpu.dot_dimension_numbers<[1], [0], [0], [1], [0, 0, 1, 1], [], []>} : vector<8x128xf32>, vector<128x128xf32>, vector<8x128xf32> -> vector<8x128xf32>
    %c0_9 = arith.constant 0 : index
    %c0_10 = arith.constant 0 : index
    %14 = vector.load %arg5[%c0_9, %c0_10] : memref<1x128xf32, #tpu.memory_space<vmem>>, vector<1x128xf32>
    %15 = vector.broadcast %14 : vector<1x128xf32> to vector<8x128xf32>
    %16 = arith.addf %13, %15 : vector<8x128xf32>
    %c0_11 = arith.constant 0 : index
    %c0_12 = arith.constant 0 : index
    %17 = vector.load %arg6[%c0_11, %c0_12] : memref<8x128xf32, #tpu.memory_space<vmem>>, vector<8x128xf32>
    tpu.vector_store %arg6[%c0_11, %c0_12], %16 {strides = array<i32>} : memref<8x128xf32, #tpu.memory_space<vmem>>, vector<8x128xf32>,
    return
  }
  func.func @transform_0(%arg0: i32) -> (i32, i32) {
    %c0_i32 = arith.constant 0 : i32
    %c0_i32_0 = arith.constant 0 : i32
    return %arg0, %c0_i32 : i32, i32
  }
  func.func @transform_1(%arg0: i32) -> (i32, i32) {
    %c0_i32 = arith.constant 0 : i32
    %c0_i32_0 = arith.constant 0 : i32
    %c0_i32_1 = arith.constant 0 : i32
    return %c0_i32, %c0_i32_0 : i32, i32
  }
  func.func @transform_2(%arg0: i32) -> (i32, i32) {
    %c0_i32 = arith.constant 0 : i32
    %c0_i32_0 = arith.constant 0 : i32
    %c0_i32_1 = arith.constant 0 : i32
    return %c0_i32, %c0_i32_0 : i32, i32
  }
  func.func @transform_3(%arg0: i32) -> (i32, i32) {
    %c0_i32 = arith.constant 0 : i32
    %c0_i32_0 = arith.constant 0 : i32
    %c0_i32_1 = arith.constant 0 : i32
    return %c0_i32, %c0_i32_0 : i32, i32
  }
  func.func @transform_4(%arg0: i32) -> (i32, i32) {
    %c0_i32 = arith.constant 0 : i32
    %c0_i32_0 = arith.constant 0 : i32
    %c0_i32_1 = arith.constant 0 : i32
    return %c0_i32, %c0_i32_0 : i32, i32
  }
  func.func @transform_5(%arg0: i32) -> (i32, i32) {
    %c0_i32 = arith.constant 0 : i32
    %c0_i32_0 = arith.constant 0 : i32
    return %arg0, %c0_i32 : i32, i32
  }
}

</mosaic_0001>

<llo_original>
// kernel: tpu_custom_call.1
$region0: #{tpu_custom_call.1}
  #allocation0 [shape = 'u32[]', space=smem, size = 0x4, offset = 0x4, fixed_abs, tag = 'smem constant byte address 0x4 - core index']
  #allocation1 [shape = 'u32[72,128]{1,0:T(1,128)}', space=vmem, size = 0x9000, scoped, tag = 'internal scratch']
  %s0 = inlined_call_operand.hbm [shape: f32[8,128], index: 0, kind: input, shape index: {}]
  %s1 = inlined_call_operand.hbm [shape: f32[128,128], index: 1, kind: input, shape index: {}]
  %s2 = inlined_call_operand.vmem [shape: f32[1,128], index: 2, kind: input, shape index: {}]
  %s3 = inlined_call_operand.hbm [shape: f32[128,128], index: 3, kind: input, shape index: {}]
  %s4 = inlined_call_operand.vmem [shape: f32[1,128], index: 4, kind: input, shape index: {}]
  %s5 = inlined_call_operand.hbm [shape: f32[8,128], index: 5, kind: output, shape index: {}]
  %s6 = sld [smem:[#allocation0]]
  $region42: #{tpu_custom_call.1} parent=0
    _
  %s8 = ssub.s32 1, %s6
  %s9 = scalar_select 0, %s8, %s6
  $region1: #{tpu_custom_call.1} parent=0
    #allocation2 [shape = 'u8[4096]{0}', space=vmem, size = 0x1000, scoped, tag = 'input window, operand 0, single buffered']
    #allocation3 [shape = 's32[1]{0}', space=sflag, size = 0x4, scoped, tag = 'scoped memory for tpu_custom_call.1']
    #allocation4 [shape = 's32[1]{0}', space=sflag, size = 0x4, scoped, tag = 'scoped memory for tpu_custom_call.1']
    #allocation5 [shape = 'u8[65536]{0}', space=vmem, size = 0x10000, scoped, tag = 'input window, operand 1, single buffered']
    #allocation6 [shape = 's32[1]{0}', space=sflag, size = 0x4, scoped, tag = 'scoped memory for tpu_custom_call.1']
    #allocation7 [shape = 'u8[65536]{0}', space=vmem, size = 0x10000, scoped, tag = 'input window, operand 3, single buffered']
    #allocation8 [shape = 'u8[4096]{0}', space=vmem, size = 0x1000, scoped, tag = 'output window, operand 0, single buffered']
    %10 = vsyncpa [#allocation3], 0
    %11 = vsyncpa [#allocation6], 0
    %12 = vsyncpa [#allocation4], 0
    // Predicated region
    $region2: #{tpu_custom_call.1} parent=1 // pred_check
      _
    $region3: #{tpu_custom_call.1} parent=1 // pred_check_branch
      %14 = sbr.rel (0) target = $region5
    $region4: #{tpu_custom_call.1} parent=1 // pred_region
      %16 = vsyncadd [#allocation3], 0
      %s18 = sshll.u32 %s0, 4
      %s19 = int_to_ptr.hbm [resolvable:$true] %s18
      %s20 = sshll.u32 [#allocation2], 4
      %s21 = int_to_ptr.vmem [resolvable:$true] %s20
      %23 = dma.hbm_to_vmem [thread:$0]  %s19, 128, %s21, [#allocation3]
    $region5: #{tpu_custom_call.1} parent=1 // pred_fallthru
      _
    // Predicated region
    $region6: #{tpu_custom_call.1} parent=1 // pred_check
      _
    $region7: #{tpu_custom_call.1} parent=1 // pred_check_branch
      %25 = sbr.rel (0) target = $region9
    $region8: #{tpu_custom_call.1} parent=1 // pred_region
      %27 = vsyncadd [#allocation6], 0
      %s28 = sshll.u32 %s1, 4
      %s29 = int_to_ptr.hbm [resolvable:$true] %s28
      %s30 = sshll.u32 [#allocation5], 4
      %s31 = int_to_ptr.vmem [resolvable:$true] %s30
      %36 = dma.hbm_to_vmem [thread:$0]  %s29, 2048, %s31, [#allocation6], 128, 128, 8
    $region9: #{tpu_custom_call.1} parent=1 // pred_fallthru
      _
    // Predicated region
    $region10: #{tpu_custom_call.1} parent=1 // pred_check
      _
    $region11: #{tpu_custom_call.1} parent=1 // pred_check_branch
      %38 = sbr.rel (0) target = $region13
    $region12: #{tpu_custom_call.1} parent=1 // pred_region
      _
    $region13: #{tpu_custom_call.1} parent=1 // pred_fallthru
      _
    // Predicated region
    $region14: #{tpu_custom_call.1} parent=1 // pred_check
      _
    $region15: #{tpu_custom_call.1} parent=1 // pred_check_branch
      %40 = sbr.rel (0) target = $region17
    $region16: #{tpu_custom_call.1} parent=1 // pred_region
      %42 = vsyncadd [#allocation6], 0
      %s43 = sshll.u32 %s3, 4
      %s44 = int_to_ptr.hbm [resolvable:$true] %s43
      %s45 = sshll.u32 [#allocation7], 4
      %s46 = int_to_ptr.vmem [resolvable:$true] %s45
      %51 = dma.hbm_to_vmem [thread:$0]  %s44, 2048, %s46, [#allocation6], 128, 128, 8
    $region17: #{tpu_custom_call.1} parent=1 // pred_fallthru
      _
    // Predicated region
    $region18: #{tpu_custom_call.1} parent=1 // pred_check
      _
    $region19: #{tpu_custom_call.1} parent=1 // pred_check_branch
      %53 = sbr.rel (0) target = $region21
    $region20: #{tpu_custom_call.1} parent=1 // pred_region
      _
    $region21: #{tpu_custom_call.1} parent=1 // pred_fallthru
      _
    // Predicated region
    $region22: #{tpu_custom_call.1} parent=1 // pred_check
      _
    $region23: #{tpu_custom_call.1} parent=1 // pred_check_branch
      %55 = sbr.rel (0) target = $region25
    $region24: #{tpu_custom_call.1} parent=1 // pred_region
      %57 = dma.done [#allocation3], 128
    $region25: #{tpu_custom_call.1} parent=1 // pred_fallthru
      _
    // Predicated region
    $region26: #{tpu_custom_call.1} parent=1 // pred_check
      _
    $region27: #{tpu_custom_call.1} parent=1 // pred_check_branch
      %59 = sbr.rel (0) target = $region29
    $region28: #{tpu_custom_call.1} parent=1 // pred_region
      %61 = dma.done [#allocation6], 2048
    $region29: #{tpu_custom_call.1} parent=1 // pred_fallthru
      _
    // Predicated region
    $region30: #{tpu_custom_call.1} parent=1 // pred_check
      _
    $region31: #{tpu_custom_call.1} parent=1 // pred_check_branch
      %63 = sbr.rel (0) target = $region33
    $region32: #{tpu_custom_call.1} parent=1 // pred_region
      %65 = dma.done [#allocation6], 2048
    $region33: #{tpu_custom_call.1} parent=1 // pred_fallthru
      _
    %v66 = vld [vmem:[#allocation2] sm:$0xff]
    %v67 = vld [vmem:[#allocation5] sm:$0xff]
    %v68 = vld [vmem:[#allocation5 + $0x8] sm:$0xff]
    %v69 = vld [vmem:[#allocation5 + $0x10] sm:$0xff]
    %v70 = vld [vmem:[#allocation5 + $0x18] sm:$0xff]
    %v71 = vld [vmem:[#allocation5 + $0x20] sm:$0xff]
    %v72 = vld [vmem:[#allocation5 + $0x28] sm:$0xff]
    %v73 = vld [vmem:[#allocation5 + $0x30] sm:$0xff]
    %v74 = vld [vmem:[#allocation5 + $0x38] sm:$0xff]
    %v75 = vld [vmem:[#allocation5 + $0x40] sm:$0xff]
    %v76 = vld [vmem:[#allocation5 + $0x48] sm:$0xff]
    %v77 = vld [vmem:[#allocation5 + $0x50] sm:$0xff]
    %v78 = vld [vmem:[#allocation5 + $0x58] sm:$0xff]
    %v79 = vld [vmem:[#allocation5 + $0x60] sm:$0xff]
    %v80 = vld [vmem:[#allocation5 + $0x68] sm:$0xff]
    %v81 = vld [vmem:[#allocation5 + $0x70] sm:$0xff]
    %v82 = vld [vmem:[#allocation5 + $0x78] sm:$0xff]
    %v83 = vld [vmem:[%s2] sm:$0x1]
    %v85 = vperm.slane %v83, 0
    %87 = vmatpush.msra.mxu0 %v82
    %88 = vmatpush.msra.mxu0 %v81
    %89 = vmatpush.msra.mxu0 %v80
    %90 = vmatpush.msra.mxu0 %v79
    %91 = vmatpush.msra.mxu0 %v78
    %92 = vmatpush.msra.mxu0 %v77
    %93 = vmatpush.msra.mxu0 %v76
    %94 = vmatpush.msra.mxu0 %v75
    %95 = vmatpush.msra.mxu0 %v74
    %96 = vmatpush.msra.mxu0 %v73
    %97 = vmatpush.msra.mxu0 %v72
    %98 = vmatpush.msra.mxu0 %v71
    %99 = vmatpush.msra.mxu0 %v70
    %100 = vmatpush.msra.mxu0 %v69
    %101 = vmatpush.msra.mxu0 %v68
    %102 = vmatpush.msra.mxu0 %v67
    %103 = vmatmul.f32.gmra.mxu0 %v66
    %v104 = vpop.f32.mrf.mxu0
    %v105 = vadd.f32 %v85, %v104
    %106 = vdwg.mxu0
    %v107 = vxor.u32 %v105, 2147483648
    %v108 = vmul.f32 %v107, 1.442695
    %v109 = vpow.pop %v108
    %v110 = vadd.f32 %v109, 1.0
    %v111 = vrcp.pop %v110
    %v112 = vmul.f32 %v110, %v111
    %v113 = vsub.f32 1.0, %v112
    %v114 = vmul.f32 %v111, %v113
    %v115 = vadd.f32 %v111, %v114
    %vm116 = vweird.f32 %v110
    %vm117 = vweird.f32 %v111
    %vm118 = vmor %vm116, %vm117
    %v119 = vsel %vm118, %v111, %v115
    %v120 = vand.u32 2147483647, %v110
    %vm121 = vcmp.eq.f32.partialorder %v120, 8.507059e+37
    %v122 = vand.u32 %v110, 2147483648
    %v123 = vor.u32 1.1754944e-38, %v122
    %v124 = vsel %vm121, %v123, %v119
    %v125 = vmul.f32 1.0, %v124
    %v126 = vmul.f32 %v105, %v125
    %v127 = vld [vmem:[#allocation7] sm:$0xff]
    %v128 = vld [vmem:[#allocation7 + $0x8] sm:$0xff]
    %v129 = vld [vmem:[#allocation7 + $0x10] sm:$0xff]
    %v130 = vld [vmem:[#allocation7 + $0x18] sm:$0xff]
    %v131 = vld [vmem:[#allocation7 + $0x20] sm:$0xff]
    %v132 = vld [vmem:[#allocation7 + $0x28] sm:$0xff]
    %v133 = vld [vmem:[#allocation7 + $0x30] sm:$0xff]
    %v134 = vld [vmem:[#allocation7 + $0x38] sm:$0xff]
    %v135 = vld [vmem:[#allocation7 + $0x40] sm:$0xff]
    %v136 = vld [vmem:[#allocation7 + $0x48] sm:$0xff]
    %v137 = vld [vmem:[#allocation7 + $0x50] sm:$0xff]
    %v138 = vld [vmem:[#allocation7 + $0x58] sm:$0xff]
    %v139 = vld [vmem:[#allocation7 + $0x60] sm:$0xff]
    %v140 = vld [vmem:[#allocation7 + $0x68] sm:$0xff]
    %v141 = vld [vmem:[#allocation7 + $0x70] sm:$0xff]
    %v142 = vld [vmem:[#allocation7 + $0x78] sm:$0xff]
    %v143 = vld [vmem:[%s4] sm:$0x1]
    %v145 = vperm.slane %v143, 0
    %147 = vmatpush.msra.mxu0 %v142
    %148 = vmatpush.msra.mxu0 %v141
    %149 = vmatpush.msra.mxu0 %v140
    %150 = vmatpush.msra.mxu0 %v139
    %151 = vmatpush.msra.mxu0 %v138
    %152 = vmatpush.msra.mxu0 %v137
    %153 = vmatpush.msra.mxu0 %v136
    %154 = vmatpush.msra.mxu0 %v135
    %155 = vmatpush.msra.mxu0 %v134
    %156 = vmatpush.msra.mxu0 %v133
    %157 = vmatpush.msra.mxu0 %v132
    %158 = vmatpush.msra.mxu0 %v131
    %159 = vmatpush.msra.mxu0 %v130
    %160 = vmatpush.msra.mxu0 %v129
    %161 = vmatpush.msra.mxu0 %v128
    %162 = vmatpush.msra.mxu0 %v127
    %163 = vmatmul.f32.gmra.mxu0 %v126
    %v164 = vpop.f32.mrf.mxu0
    %v165 = vadd.f32 %v145, %v164
    %166 = vdwg.mxu0
    %167 = vst [vmem:[#allocation8] sm:$0xff] %v165
    // Predicated region
    $region34: #{tpu_custom_call.1} parent=1 // pred_check
      _
    $region35: #{tpu_custom_call.1} parent=1 // pred_check_branch
      %169 = sbr.rel (0) target = $region37
    $region36: #{tpu_custom_call.1} parent=1 // pred_region
      %171 = vsyncadd [#allocation4], 0
      %s173 = sshll.u32 [#allocation8], 4
      %s174 = int_to_ptr.vmem [resolvable:$true] %s173
      %s175 = sshll.u32 %s5, 4
      %s176 = int_to_ptr.hbm [resolvable:$true] %s175
      %178 = dma.vmem_to_hbm [thread:$0]  %s174, 128, %s176, [#allocation4]
    $region37: #{tpu_custom_call.1} parent=1 // pred_fallthru
      _
    // Predicated region
    $region38: #{tpu_custom_call.1} parent=1 // pred_check
      _
    $region39: #{tpu_custom_call.1} parent=1 // pred_check_branch
      %180 = sbr.rel (0) target = $region41
    $region40: #{tpu_custom_call.1} parent=1 // pred_region
      %182 = dma.done [#allocation4], 128
    $region41: #{tpu_custom_call.1} parent=1 // pred_fallthru
      _
    %183 = vsyncpa [#allocation3], 1
    %184 = vsyncpa [#allocation6], 1
    %185 = vsyncpa [#allocation4], 1

// kernel: tpu_custom_call.1
$region0: #{tpu_custom_call.1}
  #allocation0 [shape = 'u32[]', space=smem, size = 0x4, offset = 0x4, fixed_abs, tag = 'smem constant byte address 0x4 - core index']
  #allocation1 [shape = 'u32[72,128]{1,0:T(1,128)}', space=vmem, size = 0x9000, scoped, tag = 'internal scratch']
  %s0 = inlined_call_operand.hbm [shape: f32[8,128], index: 0, kind: input, shape index: {}]
  %s1 = inlined_call_operand.hbm [shape: f32[128,128], index: 1, kind: input, shape index: {}]
  %s2 = inlined_call_operand.vmem [shape: f32[1,128], index: 2, kind: input, shape index: {}]
  %s3 = inlined_call_operand.hbm [shape: f32[128,128], index: 3, kind: input, shape index: {}]
  %s4 = inlined_call_operand.vmem [shape: f32[1,128], index: 4, kind: input, shape index: {}]
  %s5 = inlined_call_operand.hbm [shape: f32[8,128], index: 5, kind: output, shape index: {}]
  %s6 = sld [smem:[#allocation0]]
  $region42: #{tpu_custom_call.1} parent=0
    _
  %s8 = ssub.s32 1, %s6
  %s9 = scalar_select 0, %s8, %s6
  $region1: #{tpu_custom_call.1} parent=0
    #allocation2 [shape = 'u8[4096]{0}', space=vmem, size = 0x1000, scoped, tag = 'input window, operand 0, single buffered']
    #allocation3 [shape = 's32[1]{0}', space=sflag, size = 0x4, scoped, tag = 'scoped memory for tpu_custom_call.1']
    #allocation4 [shape = 's32[1]{0}', space=sflag, size = 0x4, scoped, tag = 'scoped memory for tpu_custom_call.1']
    #allocation5 [shape = 'u8[65536]{0}', space=vmem, size = 0x10000, scoped, tag = 'input window, operand 1, single buffered']
    #allocation6 [shape = 's32[1]{0}', space=sflag, size = 0x4, scoped, tag = 'scoped memory for tpu_custom_call.1']
    #allocation7 [shape = 'u8[65536]{0}', space=vmem, size = 0x10000, scoped, tag = 'input window, operand 3, single buffered']
    #allocation8 [shape = 'u8[4096]{0}', space=vmem, size = 0x1000, scoped, tag = 'output window, operand 0, single buffered']
    %10 = vsyncpa [#allocation3], 0
    %11 = vsyncpa [#allocation6], 0
    %12 = vsyncpa [#allocation4], 0
    // Predicated region
    $region2: #{tpu_custom_call.1} parent=1 // pred_check
      _
    $region3: #{tpu_custom_call.1} parent=1 // pred_check_branch
      %14 = sbr.rel (0) target = $region5
    $region4: #{tpu_custom_call.1} parent=1 // pred_region
      %16 = vsyncadd [#allocation3], 0
      %s18 = sshll.u32 %s0, 4
      %s19 = int_to_ptr.hbm [resolvable:$true] %s18
      %s20 = sshll.u32 [#allocation2], 4
      %s21 = int_to_ptr.vmem [resolvable:$true] %s20
      %23 = dma.hbm_to_vmem [thread:$0]  %s19, 128, %s21, [#allocation3]
    $region5: #{tpu_custom_call.1} parent=1 // pred_fallthru
      _
    // Predicated region
    $region6: #{tpu_custom_call.1} parent=1 // pred_check
      _
    $region7: #{tpu_custom_call.1} parent=1 // pred_check_branch
      %25 = sbr.rel (0) target = $region9
    $region8: #{tpu_custom_call.1} parent=1 // pred_region
      %27 = vsyncadd [#allocation6], 0
      %s28 = sshll.u32 %s1, 4
      %s29 = int_to_ptr.hbm [resolvable:$true] %s28
      %s30 = sshll.u32 [#allocation5], 4
      %s31 = int_to_ptr.vmem [resolvable:$true] %s30
      %36 = dma.hbm_to_vmem [thread:$0]  %s29, 2048, %s31, [#allocation6], 128, 128, 8
    $region9: #{tpu_custom_call.1} parent=1 // pred_fallthru
      _
    // Predicated region
    $region10: #{tpu_custom_call.1} parent=1 // pred_check
      _
    $region11: #{tpu_custom_call.1} parent=1 // pred_check_branch
      %38 = sbr.rel (0) target = $region13
    $region12: #{tpu_custom_call.1} parent=1 // pred_region
      _
    $region13: #{tpu_custom_call.1} parent=1 // pred_fallthru
      _
    // Predicated region
    $region14: #{tpu_custom_call.1} parent=1 // pred_check
      _
    $region15: #{tpu_custom_call.1} parent=1 // pred_check_branch
      %40 = sbr.rel (0) target = $region17
    $region16: #{tpu_custom_call.1} parent=1 // pred_region
      %42 = vsyncadd [#allocation6], 0
      %s43 = sshll.u32 %s3, 4
      %s44 = int_to_ptr.hbm [resolvable:$true] %s43
      %s45 = sshll.u32 [#allocation7], 4
      %s46 = int_to_ptr.vmem [resolvable:$true] %s45
      %51 = dma.hbm_to_vmem [thread:$0]  %s44, 2048, %s46, [#allocation6], 128, 128, 8
    $region17: #{tpu_custom_call.1} parent=1 // pred_fallthru
      _
    // Predicated region
    $region18: #{tpu_custom_call.1} parent=1 // pred_check
      _
    $region19: #{tpu_custom_call.1} parent=1 // pred_check_branch
      %53 = sbr.rel (0) target = $region21
    $region20: #{tpu_custom_call.1} parent=1 // pred_region
      _
    $region21: #{tpu_custom_call.1} parent=1 // pred_fallthru
      _
    // Predicated region
    $region22: #{tpu_custom_call.1} parent=1 // pred_check
      _
    $region23: #{tpu_custom_call.1} parent=1 // pred_check_branch
      %55 = sbr.rel (0) target = $region25
    $region24: #{tpu_custom_call.1} parent=1 // pred_region
      %57 = dma.done [#allocation3], 128
    $region25: #{tpu_custom_call.1} parent=1 // pred_fallthru
      _
    // Predicated region
    $region26: #{tpu_custom_call.1} parent=1 // pred_check
      _
    $region27: #{tpu_custom_call.1} parent=1 // pred_check_branch
      %59 = sbr.rel (0) target = $region29
    $region28: #{tpu_custom_call.1} parent=1 // pred_region
      %61 = dma.done [#allocation6], 2048
    $region29: #{tpu_custom_call.1} parent=1 // pred_fallthru
      _
    // Predicated region
    $region30: #{tpu_custom_call.1} parent=1 // pred_check
      _
    $region31: #{tpu_custom_call.1} parent=1 // pred_check_branch
      %63 = sbr.rel (0) target = $region33
    $region32: #{tpu_custom_call.1} parent=1 // pred_region
      %65 = dma.done [#allocation6], 2048
    $region33: #{tpu_custom_call.1} parent=1 // pred_fallthru
      _
    %v66 = vld [vmem:[#allocation2] sm:$0xff]
    %v67 = vld [vmem:[#allocation5] sm:$0xff]
    %v68 = vld [vmem:[#allocation5 + $0x8] sm:$0xff]
    %v69 = vld [vmem:[#allocation5 + $0x10] sm:$0xff]
    %v70 = vld [vmem:[#allocation5 + $0x18] sm:$0xff]
    %v71 = vld [vmem:[#allocation5 + $0x20] sm:$0xff]
    %v72 = vld [vmem:[#allocation5 + $0x28] sm:$0xff]
    %v73 = vld [vmem:[#allocation5 + $0x30] sm:$0xff]
    %v74 = vld [vmem:[#allocation5 + $0x38] sm:$0xff]
    %v75 = vld [vmem:[#allocation5 + $0x40] sm:$0xff]
    %v76 = vld [vmem:[#allocation5 + $0x48] sm:$0xff]
    %v77 = vld [vmem:[#allocation5 + $0x50] sm:$0xff]
    %v78 = vld [vmem:[#allocation5 + $0x58] sm:$0xff]
    %v79 = vld [vmem:[#allocation5 + $0x60] sm:$0xff]
    %v80 = vld [vmem:[#allocation5 + $0x68] sm:$0xff]
    %v81 = vld [vmem:[#allocation5 + $0x70] sm:$0xff]
    %v82 = vld [vmem:[#allocation5 + $0x78] sm:$0xff]
    %v83 = vld [vmem:[%s2] sm:$0x1]
    %v85 = vperm.slane %v83, 0
    %87 = vmatpush.msra.mxu0 %v82
    %88 = vmatpush.msra.mxu0 %v81
    %89 = vmatpush.msra.mxu0 %v80
    %90 = vmatpush.msra.mxu0 %v79
    %91 = vmatpush.msra.mxu0 %v78
    %92 = vmatpush.msra.mxu0 %v77
    %93 = vmatpush.msra.mxu0 %v76
    %94 = vmatpush.msra.mxu0 %v75
    %95 = vmatpush.msra.mxu0 %v74
    %96 = vmatpush.msra.mxu0 %v73
    %97 = vmatpush.msra.mxu0 %v72
    %98 = vmatpush.msra.mxu0 %v71
    %99 = vmatpush.msra.mxu0 %v70
    %100 = vmatpush.msra.mxu0 %v69
    %101 = vmatpush.msra.mxu0 %v68
    %102 = vmatpush.msra.mxu0 %v67
    %103 = vmatmul.f32.gmra.mxu0 %v66
    %v104 = vpop.f32.mrf.mxu0
    %v105 = vadd.f32 %v85, %v104
    %106 = vdwg.mxu0
    %v107 = vxor.u32 %v105, 2147483648
    %v108 = vmul.f32 %v107, 1.442695
    %v109 = vpow.pop %v108
    %v110 = vadd.f32 %v109, 1.0
    %v111 = vrcp.pop %v110
    %v112 = vmul.f32 %v110, %v111
    %v113 = vsub.f32 1.0, %v112
    %v114 = vmul.f32 %v111, %v113
    %v115 = vadd.f32 %v111, %v114
    %vm116 = vweird.f32 %v110
    %vm117 = vweird.f32 %v111
    %vm118 = vmor %vm116, %vm117
    %v119 = vsel %vm118, %v111, %v115
    %v120 = vand.u32 2147483647, %v110
    %vm121 = vcmp.eq.f32.partialorder %v120, 8.507059e+37
    %v122 = vand.u32 %v110, 2147483648
    %v123 = vor.u32 1.1754944e-38, %v122
    %v124 = vsel %vm121, %v123, %v119
    %v125 = vmul.f32 1.0, %v124
    %v126 = vmul.f32 %v105, %v125
    %v127 = vld [vmem:[#allocation7] sm:$0xff]
    %v128 = vld [vmem:[#allocation7 + $0x8] sm:$0xff]
    %v129 = vld [vmem:[#allocation7 + $0x10] sm:$0xff]
    %v130 = vld [vmem:[#allocation7 + $0x18] sm:$0xff]
    %v131 = vld [vmem:[#allocation7 + $0x20] sm:$0xff]
    %v132 = vld [vmem:[#allocation7 + $0x28] sm:$0xff]
    %v133 = vld [vmem:[#allocation7 + $0x30] sm:$0xff]
    %v134 = vld [vmem:[#allocation7 + $0x38] sm:$0xff]
    %v135 = vld [vmem:[#allocation7 + $0x40] sm:$0xff]
    %v136 = vld [vmem:[#allocation7 + $0x48] sm:$0xff]
    %v137 = vld [vmem:[#allocation7 + $0x50] sm:$0xff]
    %v138 = vld [vmem:[#allocation7 + $0x58] sm:$0xff]
    %v139 = vld [vmem:[#allocation7 + $0x60] sm:$0xff]
    %v140 = vld [vmem:[#allocation7 + $0x68] sm:$0xff]
    %v141 = vld [vmem:[#allocation7 + $0x70] sm:$0xff]
    %v142 = vld [vmem:[#allocation7 + $0x78] sm:$0xff]
    %v143 = vld [vmem:[%s4] sm:$0x1]
    %v145 = vperm.slane %v143, 0
    %147 = vmatpush.msra.mxu0 %v142
    %148 = vmatpush.msra.mxu0 %v141
    %149 = vmatpush.msra.mxu0 %v140
    %150 = vmatpush.msra.mxu0 %v139
    %151 = vmatpush.msra.mxu0 %v138
    %152 = vmatpush.msra.mxu0 %v137
    %153 = vmatpush.msra.mxu0 %v136
    %154 = vmatpush.msra.mxu0 %v135
    %155 = vmatpush.msra.mxu0 %v134
    %156 = vmatpush.msra.mxu0 %v133
    %157 = vmatpush.msra.mxu0 %v132
    %158 = vmatpush.msra.mxu0 %v131
    %159 = vmatpush.msra.mxu0 %v130
    %160 = vmatpush.msra.mxu0 %v129
    %161 = vmatpush.msra.mxu0 %v128
    %162 = vmatpush.msra.mxu0 %v127
    %163 = vmatmul.f32.gmra.mxu0 %v126
    %v164 = vpop.f32.mrf.mxu0
    %v165 = vadd.f32 %v145, %v164
    %166 = vdwg.mxu0
    %167 = vst [vmem:[#allocation8] sm:$0xff] %v165
    // Predicated region
    $region34: #{tpu_custom_call.1} parent=1 // pred_check
      _
    $region35: #{tpu_custom_call.1} parent=1 // pred_check_branch
      %169 = sbr.rel (0) target = $region37
    $region36: #{tpu_custom_call.1} parent=1 // pred_region
      %171 = vsyncadd [#allocation4], 0
      %s173 = sshll.u32 [#allocation8], 4
      %s174 = int_to_ptr.vmem [resolvable:$true] %s173
      %s175 = sshll.u32 %s5, 4
      %s176 = int_to_ptr.hbm [resolvable:$true] %s175
      %178 = dma.vmem_to_hbm [thread:$0]  %s174, 128, %s176, [#allocation4]
    $region37: #{tpu_custom_call.1} parent=1 // pred_fallthru
      _
    // Predicated region
    $region38: #{tpu_custom_call.1} parent=1 // pred_check
      _
    $region39: #{tpu_custom_call.1} parent=1 // pred_check_branch
      %180 = sbr.rel (0) target = $region41
    $region40: #{tpu_custom_call.1} parent=1 // pred_region
      %182 = dma.done [#allocation4], 128
    $region41: #{tpu_custom_call.1} parent=1 // pred_fallthru
      _
    %183 = vsyncpa [#allocation3], 1
    %184 = vsyncpa [#allocation6], 1
    %185 = vsyncpa [#allocation4], 1

</llo_original>
